<compile_context>
chip_gen: v5e
topology: v5e:2x2
jax: 0.10.0
libtpu: 0.0.40
codegen_flags: <defaults>
</compile_context>

<pallas_src>
import functools
import math

import jax
import jax.numpy as jnp
from jax.experimental import pallas as pl
from jax.experimental.pallas import tpu as pltpu


def _round_up(x, m):
    return ((x + m - 1) // m) * m


def _cdiv(a, b):
    return -(-a // b)


def _vmem_capacity_bytes():
    try:
        info = pltpu.get_tpu_info()
        cap = getattr(info, "vmem_capacity_bytes", None)
        if cap:
            return int(cap)
    except Exception:
        pass
    return 64 * 1024 * 1024  # conservative (v7x-sized) fallback


# -----------------------------------------------------------------------------
# Kernel 1: single-pass SDPA that also materializes the attention matrix.
# Block shapes:
#   q: (bt, tq, d)   k: (bt, num_v_p, d)   v: (bt, num_v_p, dv_p)
#   [bias: (1, 1, num_v_p)]  out: (bt, tq, dv_p)  attn: (bt, tq, num_v_p)
# -----------------------------------------------------------------------------
def _sdpa_attn_kernel(*refs, scale_inv, has_bias):
    if has_bias:
        q_ref, k_ref, v_ref, bias_ref, out_ref, attn_ref = refs
    else:
        q_ref, k_ref, v_ref, out_ref, attn_ref = refs
        bias_ref = None

    # Fold the 1/sqrt(d) scale into Q (d elements/row, not num_v_p).
    q = q_ref[...] * scale_inv
    k = k_ref[...]
    v = v_ref[...]

    # Q @ K^T with contraction over the last dim of both operands (no K^T
    # materialized), native-dtype MXU inputs, f32 accumulation.
    s = jnp.einsum("bqd,bkd->bqk", q, k, preferred_element_type=jnp.float32)
    if bias_ref is not None:
        # Precomputed additive bias row: 0 for valid key columns, -1e30 for
        # padded ones. Broadcast add replaces the old iota+compare+where pair.
        s = s + bias_ref[...]

    # TODO(synk): training-mode nn.Dropout (random mask applied to the scores
    # before softmax) is not implemented; eval-mode (identity) behaviour only.

    # Numerically-stable softmax over num_v (last axis), in f32.
    m = jnp.max(s, axis=-1, keepdims=True)
    e = jnp.exp(s - m)
    denom = jnp.sum(e, axis=-1, keepdims=True)
    p = e * pl.reciprocal(denom, approx=True)  # (bt, tq, num_v_p) f32

    # Single cast, reused for the attn store and the attn @ V matmul.
    p_low = p.astype(v.dtype)
    o = jnp.einsum("bqk,bkd->bqd", p_low, v, preferred_element_type=jnp.float32)

    if attn_ref.dtype == p_low.dtype:
        attn_ref[...] = p_low
    else:
        attn_ref[...] = p.astype(attn_ref.dtype)
    out_ref[...] = o.astype(out_ref.dtype)


# -----------------------------------------------------------------------------
# Kernel 2: flash-style kv-tiled SDPA (no attention output). Online softmax
# with m/l/acc accumulators in VMEM scratch; normalization applied over dv_p
# after the second matmul.
# -----------------------------------------------------------------------------
def _sdpa_flash_kernel(*refs, scale_inv, has_bias):
    if has_bias:
        q_ref, k_ref, v_ref, bias_ref, out_ref, m_sc, l_sc, acc_sc = refs
    else:
        q_ref, k_ref, v_ref, out_ref, m_sc, l_sc, acc_sc = refs
        bias_ref = None

    ki = pl.program_id(2)

    @pl.when(ki == 0)
    def _():
        m_sc[...] = jnp.full(m_sc.shape, -jnp.inf, m_sc.dtype)
        l_sc[...] = jnp.zeros(l_sc.shape, l_sc.dtype)
        acc_sc[...] = jnp.zeros(acc_sc.shape, acc_sc.dtype)

    q = q_ref[...] * scale_inv
    s = jnp.einsum("bqd,bkd->bqk", q, k_ref[...],
                   preferred_element_type=jnp.float32)
    if bias_ref is not None:
        # Additive mask uses -1e30 (not -inf) so exp(s - m) never hits NaN.
        s = s + bias_ref[...]

    m_prev = m_sc[...]
    m_new = jnp.maximum(m_prev, jnp.max(s, axis=-1, keepdims=True))
    alpha = jnp.exp(m_prev - m_new)
    p = jnp.exp(s - m_new)
    l_sc[...] = alpha * l_sc[...] + jnp.sum(p, axis=-1, keepdims=True)
    acc_sc[...] = alpha * acc_sc[...] + jnp.einsum(
        "bqk,bkd->bqd", p.astype(v_ref.dtype), v_ref[...],
        preferred_element_type=jnp.float32)
    m_sc[...] = m_new

    @pl.when(ki == pl.num_programs(2) - 1)
    def _():
        out_ref[...] = (acc_sc[...] * pl.reciprocal(l_sc[...], approx=True)
                        ).astype(out_ref.dtype)


# -----------------------------------------------------------------------------
# Wrapper
# -----------------------------------------------------------------------------
def scaled_dot_product_attention(query, key, value, *,
                                 return_attn=True, attn_dtype=None):
    """Pallas implementation of ScaledDotProductAttention.forward (eval mode).

    query: (B, num_q, num_dim)
    key:   (B, num_v, num_dim)
    value: (B, num_v, num_dim_value)

    return_attn=True  -> (out, attn) like the PyTorch module.
    return_attn=False -> out only (kv-tiled flash path, no attn HBM writeback).
    attn_dtype: dtype of the returned attn matrix (default query.dtype; pass
                jnp.bfloat16 to halve the attn HBM traffic).
    """
    B, num_q, num_dim = query.shape
    Bk, num_v, num_dim_k = key.shape
    Bv, num_v2, num_dim_value = value.shape
    assert B == Bk == Bv and num_dim == num_dim_k and num_v == num_v2

    out_dtype = query.dtype
    attn_dtype = (jnp.dtype(query.dtype) if attn_dtype is None
                  else jnp.dtype(attn_dtype))
    scale_inv = 1.0 / math.pow(num_dim, 0.5)

    q_isz = jnp.dtype(query.dtype).itemsize
    k_isz = jnp.dtype(key.dtype).itemsize
    v_isz = jnp.dtype(value.dtype).itemsize
    out_isz = jnp.dtype(out_dtype).itemsize
    attn_isz = attn_dtype.itemsize

    # Generation-aware VMEM budget: ~32 MiB working set on v7x (64 MiB VMEM),
    # ~72 MiB on v5e/v6e (128 MiB VMEM); scoped limit leaves Mosaic headroom.
    vmem_cap = _vmem_capacity_bytes()
    vmem_limit = min(vmem_cap * 5 // 8, vmem_cap - 16 * 1024 * 1024)
    vmem_limit = max(vmem_limit, 24 * 1024 * 1024)
    budget = max(vmem_limit - 8 * 1024 * 1024, 8 * 1024 * 1024)

    num_q_8 = _round_up(num_q, 8)
    dv_p = _round_up(num_dim_value, 128)

    # Advisory cost estimate for XLA's scheduler.
    flops = 2 * B * num_q * num_v * (num_dim + num_dim_value)
    transcendentals = B * num_q * num_v
    bytes_accessed = (B * num_q * num_dim * q_isz
                      + B * num_v * num_dim * k_isz
                      + B * num_v * num_dim_value * v_isz
                      + B * num_q * num_dim_value * out_isz
                      + (B * num_q * num_v * attn_isz if return_attn else 0))
    cost = pl.CostEstimate(flops=int(flops),
                           transcendentals=int(transcendentals),
                           bytes_accessed=int(bytes_accessed))

    def _pad(x, target_shape):
        pads = [(0, t - s) for s, t in zip(x.shape, target_shape)]
        if any(p[1] for p in pads):
            x = jnp.pad(x, pads)
        return x

    def _make_bias(num_v_pad):
        col = jnp.arange(num_v_pad, dtype=jnp.int32)
        bias = jnp.where(col < num_v, 0.0, -1e30).astype(jnp.float32)
        return bias.reshape(1, 1, num_v_pad)

    # =========================================================================
    # Path A: module-faithful (out, attn).  Full-num_v softmax, lane-dense
    # padded outputs.
    # =========================================================================
    if return_attn:
        num_v_p = _round_up(num_v, 128)
        needs_mask = num_v_p != num_v

        def fits(bt_, tq_):
            io = 2 * bt_ * (tq_ * num_dim * q_isz
                            + num_v_p * num_dim * k_isz
                            + num_v_p * dv_p * v_isz
                            + tq_ * dv_p * out_isz
                            + tq_ * num_v_p * attn_isz)
            f32 = bt_ * (3 * tq_ * num_v_p + tq_ * dv_p) * 4
            return io + f32 <= budget

        # q tile: as large as the budget allows (bigger blocks -> closer to the
        # HBM roofline; v5e/v6e's larger VMEM automatically yields 512-class
        # tiles, v7x settles lower).
        tq = min(num_q_8, 512)
        while tq > 8 and not fits(1, tq):
            tq = max(8, _round_up(tq // 2, 8))

        # Batch tile: largest that fits (amortizes ~0.35us per-grid-step cost).
        bt = 1
        for cand in range(min(B, 8), 0, -1):
            if fits(cand, tq):
                bt = cand
                break

        # Keep >= 2 parallel grid steps so both v7x TensorCores get work.
        def grid_parallel(bt_, tq_):
            return _cdiv(B, bt_) * (_round_up(num_q_8, tq_) // tq_)

        if grid_parallel(bt, tq) < 2:
            if B >= 2:
                bt = (B + 1) // 2
            elif tq > 8 and num_q_8 > 8:
                tq = max(8, _round_up(tq // 2, 8))

        num_q_p = _round_up(num_q_8, tq)
        B_p = _round_up(B, bt)

        q_p = _pad(query, (B_p, num_q_p, num_dim))
        k_p = _pad(key, (B_p, num_v_p, num_dim))
        v_p = _pad(value, (B_p, num_v_p, dv_p))

        inputs = [q_p, k_p, v_p]
        in_specs = [
            pl.BlockSpec((bt, tq, num_dim), lambda b, qi: (b, qi, 0)),
            pl.BlockSpec((bt, num_v_p, num_dim), lambda b, qi: (b, 0, 0)),
            pl.BlockSpec((bt, num_v_p, dv_p), lambda b, qi: (b, 0, 0)),
        ]
        if needs_mask:
            inputs.append(_make_bias(num_v_p))
            in_specs.append(
                pl.BlockSpec((1, 1, num_v_p), lambda b, qi: (0, 0, 0)))

        out_shapes = (
            jax.ShapeDtypeStruct((B_p, num_q_p, dv_p), out_dtype),
            jax.ShapeDtypeStruct((B_p, num_q_p, num_v_p), attn_dtype),
        )
        out_specs = [
            pl.BlockSpec((bt, tq, dv_p), lambda b, qi: (b, qi, 0)),
            pl.BlockSpec((bt, tq, num_v_p), lambda b, qi: (b, qi, 0)),
        ]

        kernel = functools.partial(_sdpa_attn_kernel,
                                   scale_inv=scale_inv, has_bias=needs_mask)

        grid_spec = pltpu.PrefetchScalarGridSpec(
            num_scalar_prefetch=0,
            grid=(B_p // bt, num_q_p // tq),
            in_specs=in_specs,
            out_specs=out_specs,
        )

        out_p, attn_p = pl.pallas_call(
            kernel,
            out_shape=out_shapes,
            grid_spec=grid_spec,
            compiler_params=pltpu.CompilerParams(
                dimension_semantics=("parallel", "parallel"),
                vmem_limit_bytes=int(vmem_limit),
            ),
            cost_estimate=cost,
        )(*inputs)

        out = out_p[:B, :num_q, :num_dim_value]
        attn = attn_p[:B, :num_q, :num_v]
        return out, attn

    # =========================================================================
    # Path B: out only.  kv-tiled flash-style online softmax; no attn writeback
    # and VMEM bounded by O(tq*tkv) regardless of num_v.
    # =========================================================================
    tkv = min(_round_up(num_v, 128), 512)
    tq = min(num_q_8, 256)

    def fits(bt_, tq_, tkv_):
        io = 2 * bt_ * (tq_ * num_dim * q_isz
                        + tkv_ * num_dim * k_isz
                        + tkv_ * dv_p * v_isz
                        + tq_ * dv_p * out_isz)
        scratch = bt_ * tq_ * (dv_p + 2) * 4
        f32 = bt_ * (2 * tq_ * tkv_ * 4 + tq_ * tkv_ * v_isz)
        return io + scratch + f32 <= budget

    while not fits(1, tq, tkv):
        if tkv > 128 and tkv >= tq:
            tkv = max(128, tkv // 2)
        elif tq > 8:
            tq = max(8, _round_up(tq // 2, 8))
        elif tkv > 128:
            tkv = max(128, tkv // 2)
        else:
            break

    bt = 1
    for cand in range(min(B, 8), 0, -1):
        if fits(cand, tq, tkv):
            bt = cand
            break

    # >= 2 parallel grid steps for v7x's two TensorCores (kv axis is serial).
    if _cdiv(B, bt) * (_round_up(num_q_8, tq) // tq) < 2:
        if B >= 2:
            bt = (B + 1) // 2
        elif tq > 8 and num_q_8 > 8:
            tq = max(8, _round_up(tq // 2, 8))

    num_q_p = _round_up(num_q_8, tq)
    num_v_p = _round_up(num_v, tkv)
    needs_mask = num_v_p != num_v
    B_p = _round_up(B, bt)

    q_p = _pad(query, (B_p, num_q_p, num_dim))
    k_p = _pad(key, (B_p, num_v_p, num_dim))
    v_p = _pad(value, (B_p, num_v_p, dv_p))

    inputs = [q_p, k_p, v_p]
    in_specs = [
        pl.BlockSpec((bt, tq, num_dim), lambda b, qi, ki: (b, qi, 0)),
        pl.BlockSpec((bt, tkv, num_dim), lambda b, qi, ki: (b, ki, 0)),
        pl.BlockSpec((bt, tkv, dv_p), lambda b, qi, ki: (b, ki, 0)),
    ]
    if needs_mask:
        inputs.append(_make_bias(num_v_p))
        in_specs.append(
            pl.BlockSpec((1, 1, tkv), lambda b, qi, ki: (0, 0, ki)))

    kernel = functools.partial(_sdpa_flash_kernel,
                               scale_inv=scale_inv, has_bias=needs_mask)

    grid_spec = pltpu.PrefetchScalarGridSpec(
        num_scalar_prefetch=0,
        grid=(B_p // bt, num_q_p // tq, num_v_p // tkv),
        in_specs=in_specs,
        out_specs=pl.BlockSpec((bt, tq, dv_p), lambda b, qi, ki: (b, qi, 0)),
        scratch_shapes=[
            pltpu.VMEM((bt, tq, 1), jnp.float32),      # running max m
            pltpu.VMEM((bt, tq, 1), jnp.float32),      # running sum l
            pltpu.VMEM((bt, tq, dv_p), jnp.float32),   # output accumulator
        ],
    )

    out_p = pl.pallas_call(
        kernel,
        out_shape=jax.ShapeDtypeStruct((B_p, num_q_p, dv_p), out_dtype),
        grid_spec=grid_spec,
        compiler_params=pltpu.CompilerParams(
            dimension_semantics=("parallel", "parallel", "arbitrary"),
            vmem_limit_bytes=int(vmem_limit),
        ),
        cost_estimate=cost,
    )(*inputs)

    return out_p[:B, :num_q, :num_dim_value]


def _reference(query, key, value):
    scale = math.pow(query.shape[-1], 0.5)
    s = jnp.einsum("bqd,bkd->bqk", query, key) / scale
    p = jax.nn.softmax(s, axis=-1)
    o = jnp.einsum("bqk,bkd->bqd", p, value)
    return o, p


if __name__ == "__main__":
    # Small shapes consistent with the module's forward signature.
    B, num_q, num_v, num_dim, num_dim_value = 2, 8, 16, 32, 64

    key0 = jax.random.PRNGKey(0)
    kq, kk, kv = jax.random.split(key0, 3)
    query = jax.random.normal(kq, (B, num_q, num_dim), dtype=jnp.float32)
    key_t = jax.random.normal(kk, (B, num_v, num_dim), dtype=jnp.float32)
    value = jax.random.normal(kv, (B, num_v, num_dim_value), dtype=jnp.float32)

    # Module-faithful path: (out, attn).
    out, attn = scaled_dot_product_attention(query, key_t, value)
    out = jax.block_until_ready(out)
    attn = jax.block_until_ready(attn)

    # Flash-style no-attn path.
    out_noattn = scaled_dot_product_attention(query, key_t, value,
                                              return_attn=False)
    out_noattn = jax.block_until_ready(out_noattn)

    # Correctness vs. pure-JAX reference (tolerance loosened slightly for the
    # approx EUP reciprocal in the softmax normalization).
    out_ref, attn_ref = _reference(query, key_t, value)
    assert out.shape == (B, num_q, num_dim_value)
    assert attn.shape == (B, num_q, num_v)
    assert out_noattn.shape == (B, num_q, num_dim_value)
    assert jnp.allclose(attn, attn_ref, atol=2e-3, rtol=2e-3)
    assert jnp.allclose(out, out_ref, atol=2e-3, rtol=2e-3)
    assert jnp.allclose(out_noattn, out_ref, atol=2e-3, rtol=2e-3)

    print("KERNEL_OK")
</pallas_src>

<mosaic_0001>
module attributes {stable_mosaic.version = 11 : i64} {
  func.func @_sdpa_attn_kernel(%arg0: i32, %arg1: i32, %arg2: memref<1x8x32xf32, #tpu.memory_space<vmem>>, %arg3: memref<1x128x32xf32, #tpu.memory_space<vmem>>, %arg4: memref<1x128x128xf32, #tpu.memory_space<vmem>>, %arg5: memref<1x1x128xf32, #tpu.memory_space<vmem>>, %arg6: memref<1x8x128xf32, #tpu.memory_space<vmem>>, %arg7: memref<1x8x128xf32, #tpu.memory_space<vmem>>) attributes {dimension_semantics = [#tpu.dimension_semantics<parallel>, #tpu.dimension_semantics<parallel>], iteration_bounds = array<i64: 2, 1>, scalar_prefetch = 0 : i64, scratch_operands = 0 : i64, tpu.core_type = #tpu.core_type<tc>, window_params = [{transform_indices = @transform_0, window_bounds = array<i64: 1, 8, 32>}, {transform_indices = @transform_1, window_bounds = array<i64: 1, 128, 32>}, {transform_indices = @transform_2, window_bounds = array<i64: 1, 128, 128>}, {pipeline_mode = #tpu.pipeline_mode<synchronous>, transform_indices = @transform_3, window_bounds = array<i64: 1, 1, 128>}, {transform_indices = @transform_4, window_bounds = array<i64: 1, 8, 128>}, {transform_indices = @transform_5, window_bounds = array<i64: 1, 8, 128>}]} {
    %c0 = arith.constant 0 : index
    %c0_0 = arith.constant 0 : index
    %c0_1 = arith.constant 0 : index
    %0 = vector.load %arg2[%c0, %c0_0, %c0_1] : memref<1x8x32xf32, #tpu.memory_space<vmem>>, vector<1x8x32xf32>
    %cst = arith.constant 0.176776692 : f32
    %1 = vector.broadcast %cst : f32 to vector<1x8x32xf32>
    %2 = arith.mulf %0, %1 : vector<1x8x32xf32>
    %c0_2 = arith.constant 0 : index
    %c0_3 = arith.constant 0 : index
    %c0_4 = arith.constant 0 : index
    %3 = vector.load %arg3[%c0_2, %c0_3, %c0_4] : memref<1x128x32xf32, #tpu.memory_space<vmem>>, vector<1x128x32xf32>
    %c0_5 = arith.constant 0 : index
    %c0_6 = arith.constant 0 : index
    %c0_7 = arith.constant 0 : index
    %4 = vector.load %arg4[%c0_5, %c0_6, %c0_7] : memref<1x128x128xf32, #tpu.memory_space<vmem>>, vector<1x128x128xf32>
    "tpu.trace_start"() <{level = 10 : i32, message = "bqd,bkd->bqk"}> : () -> ()
    %cst_8 = arith.constant dense<0.000000e+00> : vector<1x8x128xf32>
    %5 = tpu.matmul %2, %3, %cst_8 {dimension_numbers = #tpu.dot_dimension_numbers<[2], [2], [1], [1], [0, 0, 0, 1, 1, 1], [0], [0]>} : vector<1x8x32xf32>, vector<1x128x32xf32>, vector<1x8x128xf32> -> vector<1x8x128xf32>
    "tpu.trace_stop"() : () -> ()
    %c0_9 = arith.constant 0 : index
    %c0_10 = arith.constant 0 : index
    %c0_11 = arith.constant 0 : index
    %6 = vector.load %arg5[%c0_9, %c0_10, %c0_11] : memref<1x1x128xf32, #tpu.memory_space<vmem>>, vector<1x1x128xf32>
    %7 = vector.broadcast %6 : vector<1x1x128xf32> to vector<1x8x128xf32>
    %8 = arith.addf %5, %7 : vector<1x8x128xf32>
    %cst_12 = arith.constant dense<0xFF800000> : vector<1x8xf32>
    %9 = vector.multi_reduction <maximumf>, %8, %cst_12 [2] : vector<1x8x128xf32> to vector<1x8xf32>
    %10 = vector.shape_cast %9 : vector<1x8xf32> to vector<1x8x1xf32>
    %11 = vector.broadcast %10 : vector<1x8x1xf32> to vector<1x8x128xf32>
    %12 = arith.subf %8, %11 : vector<1x8x128xf32>
    %13 = math.exp %12 : vector<1x8x128xf32>
    %cst_13 = arith.constant dense<0.000000e+00> : vector<1x8xf32>
    %14 = vector.multi_reduction <add>, %13, %cst_13 [2] : vector<1x8x128xf32> to vector<1x8xf32>
    %15 = vector.shape_cast %14 : vector<1x8xf32> to vector<1x8x1xf32>
    %16 = tpu.reciprocal %15 {approx = true} : vector<1x8x1xf32> -> vector<1x8x1xf32>
    %17 = vector.broadcast %16 : vector<1x8x1xf32> to vector<1x8x128xf32>
    %18 = arith.mulf %13, %17 : vector<1x8x128xf32>
    "tpu.trace_start"() <{level = 10 : i32, message = "bqk,bkd->bqd"}> : () -> ()
    %cst_14 = arith.constant dense<0.000000e+00> : vector<1x8x128xf32>
    %19 = tpu.matmul %18, %4, %cst_14 {dimension_numbers = #tpu.dot_dimension_numbers<[2], [1], [1], [2], [0, 0, 0, 1, 1, 2], [0], [0]>} : vector<1x8x128xf32>, vector<1x128x128xf32>, vector<1x8x128xf32> -> vector<1x8x128xf32>
    "tpu.trace_stop"() : () -> ()
    %c0_15 = arith.constant 0 : index
    %c0_16 = arith.constant 0 : index
    %c0_17 = arith.constant 0 : index
    %20 = vector.load %arg7[%c0_15, %c0_16, %c0_17] : memref<1x8x128xf32, #tpu.memory_space<vmem>>, vector<1x8x128xf32>
    tpu.vector_store %arg7[%c0_15, %c0_16, %c0_17], %18 {strides = array<i32>} : memref<1x8x128xf32, #tpu.memory_space<vmem>>, vector<1x8x128xf32>,
    %c0_18 = arith.constant 0 : index
    %c0_19 = arith.constant 0 : index
    %c0_20 = arith.constant 0 : index
    %21 = vector.load %arg6[%c0_18, %c0_19, %c0_20] : memref<1x8x128xf32, #tpu.memory_space<vmem>>, vector<1x8x128xf32>
    tpu.vector_store %arg6[%c0_18, %c0_19, %c0_20], %19 {strides = array<i32>} : memref<1x8x128xf32, #tpu.memory_space<vmem>>, vector<1x8x128xf32>,
    return
  }
  func.func @transform_0(%arg0: i32, %arg1: i32) -> (i32, i32, i32) {
    %c0_i32 = arith.constant 0 : i32
    %c0_i32_0 = arith.constant 0 : i32
    return %arg0, %arg1, %c0_i32 : i32, i32, i32
  }
  func.func @transform_1(%arg0: i32, %arg1: i32) -> (i32, i32, i32) {
    %c0_i32 = arith.constant 0 : i32
    %c0_i32_0 = arith.constant 0 : i32
    %c0_i32_1 = arith.constant 0 : i32
    return %arg0, %c0_i32, %c0_i32_0 : i32, i32, i32
  }
  func.func @transform_2(%arg0: i32, %arg1: i32) -> (i32, i32, i32) {
    %c0_i32 = arith.constant 0 : i32
    %c0_i32_0 = arith.constant 0 : i32
    %c0_i32_1 = arith.constant 0 : i32
    return %arg0, %c0_i32, %c0_i32_0 : i32, i32, i32
  }
  func.func @transform_3(%arg0: i32, %arg1: i32) -> (i32, i32, i32) {
    %c0_i32 = arith.constant 0 : i32
    %c0_i32_0 = arith.constant 0 : i32
    %c0_i32_1 = arith.constant 0 : i32
    %c0_i32_2 = arith.constant 0 : i32
    return %c0_i32, %c0_i32_0, %c0_i32_1 : i32, i32, i32
  }
  func.func @transform_4(%arg0: i32, %arg1: i32) -> (i32, i32, i32) {
    %c0_i32 = arith.constant 0 : i32
    %c0_i32_0 = arith.constant 0 : i32
    return %arg0, %arg1, %c0_i32 : i32, i32, i32
  }
  func.func @transform_5(%arg0: i32, %arg1: i32) -> (i32, i32, i32) {
    %c0_i32 = arith.constant 0 : i32
    %c0_i32_0 = arith.constant 0 : i32
    return %arg0, %arg1, %c0_i32 : i32, i32, i32
  }
}

</mosaic_0001>

<llo_original>
// kernel: tpu_custom_call.1
$region0: #{tpu_custom_call.1}
  #allocation0 [shape = 'u32[]', space=smem, size = 0x4, offset = 0x4, fixed_abs, tag = 'smem constant byte address 0x4 - core index']
  #allocation1 [shape = 'u32[72,128]{1,0:T(1,128)}', space=vmem, size = 0x9000, scoped, tag = 'internal scratch']
  %s0 = inlined_call_operand.vmem [shape: f32[2,8,32], index: 0, kind: input, shape index: {}]
  %s1 = inlined_call_operand.vmem [shape: f32[2,128,32], index: 1, kind: input, shape index: {}]
  %s2 = inlined_call_operand.vmem [shape: f32[2,128,128], index: 2, kind: input, shape index: {}]
  %s3 = inlined_call_operand.vmem [shape: f32[1,1,128], index: 3, kind: input, shape index: {}]
  %s4 = inlined_call_operand.hbm [shape: f32[2,8,128], index: 4, kind: output, shape index: {0}]
  %s5 = inlined_call_operand.hbm [shape: f32[2,8,128], index: 5, kind: output, shape index: {1}]
  %6 = xla_tuple %s4, %s5
  %s7 = sld [smem:[#allocation0]]
  $region57: #{tpu_custom_call.1} parent=0
    _
  %s9 = ssub.s32 1, %s7
  %s10 = scalar_select 0, %s9, %s7
  $region1: #{tpu_custom_call.1} parent=0
    #allocation2 [shape = 'u8[8192]{0}', space=vmem, size = 0x2000, scoped, tag = 'output window, operand 0']
    #allocation3 [shape = 's32[2]{0}', space=sflag, size = 0x8, scoped, tag = 'scoped memory for tpu_custom_call.1']
    #allocation4 [shape = 'u8[8192]{0}', space=vmem, size = 0x2000, scoped, tag = 'output window, operand 1']
    #allocation5 [shape = 's32[2]{0}', space=sflag, size = 0x8, scoped, tag = 'scoped memory for tpu_custom_call.1']
    %11 = vsyncpa [#allocation3], 0
    %s12 = scalar_lea.sflag [#allocation3], 1
    %13 = vsyncpa %s12, 0
    %14 = vsyncpa [#allocation5], 0
    %s15 = scalar_lea.sflag [#allocation5], 1
    %16 = vsyncpa %s15, 0
    loop: start=0, step=1, limit=4
    $region2: #{tpu_custom_call.1} parent=1 // loop_pre_header
      _
    $region3: #{tpu_custom_call.1} parent=1 // loop_header
      %s18 = sphi 0, %s22
      %p19 = scmp.ge.s32.totalorder %s18, 4
      %s25 = sphi 0, %s37
      %s26 = sphi 0, %s33
      %s27 = sphi 0, %s25
      %s28 = sphi 0, %s26
      %s29 = sphi 0, %s27
      %s30 = sphi 0, %s28
      %s42 = sphi 0, %s44
      %s45 = sphi 0, %s42
      %s46 = sphi 0, %s45
      %s62 = sphi 0, %s46
      %s68 = sphi 0, %s70
      %s71 = sphi 0, %s68
      %s72 = sphi 0, %s71
      %s88 = sphi 0, %s72
      %s94 = sphi 0, %s96
      %s97 = sphi 0, %s94
      %s98 = sphi 0, %s97
      %s114 = sphi 0, %s98
      %s118 = sphi 0, %s118
      %s120 = sphi 0, %s118
      %s121 = sphi 0, %s120
      %s135 = sphi 0, %s121
      %s143 = sphi 0, %s145
      %s146 = sphi 0, %s143
      %s147 = sphi 0, %s146
      %s163 = sphi 0, %s147
      %s171 = sphi 0, %s173
      %s174 = sphi 0, %s171
      %s175 = sphi 0, %s174
      %s191 = sphi 0, %s175
    $region4: #{tpu_custom_call.1} parent=1 // loop_header_branch
      %21 = sbr.rel (%p19) target = $region8
    $region5: #{tpu_custom_call.1} parent=1 // loop_body
      %s23 = ssub.s32 %s18, 1
      %s24 = ssub.s32 %s18, 2
      %s31 = sadd.s32 1, %s26
      %p32 = scmp.ge.s32.totalorder %s31, 1
      %s33 = scalar_select %p32, 0, %s31
      %s34 = sadd.s32 1, %s25
      %s35 = scalar_select %p32, %s34, %s25
      %p36 = scmp.ge.s32.totalorder %s35, 2
      %s37 = scalar_select %p36, 0, %s35
      %s38 = ssub.s32 %s25, %s37
      %s39 = ssub.s32 %s26, %s33
      %s40 = sor.u32 %s38, %s39
      %p41 = scmp.eq.s32.totalorder %s40, 0
      %s43 = sadd.s32 %s42, 1
      %s44 = scalar_select %p41, %s42, %s43
      %p47 = pneg %p41
      %p48 = scmp.eq.s32.totalorder %s18, 1
      %p49 = por %p47, %p48
      %p50 = scmp.ne.s32.totalorder %s42, %s45
      %p51 = scmp.eq.s32.totalorder %s18, 0
      %p52 = por %p50, %p51
      %p53 = scmp.ne.s32.totalorder %s42, %s45
      %p54 = scmp.eq.s32.totalorder %s23, 1
      %p55 = por %p53, %p54
      %p56 = scmp.ne.s32.totalorder %s45, %s46
      %p57 = scmp.eq.s32.totalorder %s23, 0
      %p58 = por %p56, %p57
      %p59 = scmp.ne.s32.totalorder %s45, %s46
      %p60 = scmp.eq.s32.totalorder %s24, 1
      %p61 = por %p59, %p60
      %p63 = scmp.ne.s32.totalorder %s46, %s62
      %p64 = scmp.eq.s32.totalorder %s24, 0
      %p65 = por %p63, %p64
      %s66 = ssub.s32 %s25, %s37
      %p67 = scmp.eq.s32.totalorder %s66, 0
      %s69 = sadd.s32 %s68, 1
      %s70 = scalar_select %p67, %s68, %s69
      %p73 = pneg %p67
      %p74 = scmp.eq.s32.totalorder %s18, 1
      %p75 = por %p73, %p74
      %p76 = scmp.ne.s32.totalorder %s68, %s71
      %p77 = scmp.eq.s32.totalorder %s18, 0
      %p78 = por %p76, %p77
      %p79 = scmp.ne.s32.totalorder %s68, %s71
      %p80 = scmp.eq.s32.totalorder %s23, 1
      %p81 = por %p79, %p80
      %p82 = scmp.ne.s32.totalorder %s71, %s72
      %p83 = scmp.eq.s32.totalorder %s23, 0
      %p84 = por %p82, %p83
      %p85 = scmp.ne.s32.totalorder %s71, %s72
      %p86 = scmp.eq.s32.totalorder %s24, 1
      %p87 = por %p85, %p86
      %p89 = scmp.ne.s32.totalorder %s72, %s88
      %p90 = scmp.eq.s32.totalorder %s24, 0
      %p91 = por %p89, %p90
      %s92 = ssub.s32 %s25, %s37
      %p93 = scmp.eq.s32.totalorder %s92, 0
      %s95 = sadd.s32 %s94, 1
      %s96 = scalar_select %p93, %s94, %s95
      %p99 = pneg %p93
      %p100 = scmp.eq.s32.totalorder %s18, 1
      %p101 = por %p99, %p100
      %p102 = scmp.ne.s32.totalorder %s94, %s97
      %p103 = scmp.eq.s32.totalorder %s18, 0
      %p104 = por %p102, %p103
      %p105 = scmp.ne.s32.totalorder %s94, %s97
      %p106 = scmp.eq.s32.totalorder %s23, 1
      %p107 = por %p105, %p106
      %p108 = scmp.ne.s32.totalorder %s97, %s98
      %p109 = scmp.eq.s32.totalorder %s23, 0
      %p110 = por %p108, %p109
      %p111 = scmp.ne.s32.totalorder %s97, %s98
      %p112 = scmp.eq.s32.totalorder %s24, 1
      %p113 = por %p111, %p112
      %p115 = scmp.ne.s32.totalorder %s98, %s114
      %p116 = scmp.eq.s32.totalorder %s24, 0
      %p117 = por %p115, %p116
      %s119 = sadd.s32 %s118, 1
      %p122 = scmp.eq.s32.totalorder %s18, 1
      %p123 = scmp.ne.s32.totalorder %s118, %s120
      %p124 = scmp.eq.s32.totalorder %s18, 0
      %p125 = por %p123, %p124
      %p126 = scmp.ne.s32.totalorder %s118, %s120
      %p127 = scmp.eq.s32.totalorder %s23, 1
      %p128 = por %p126, %p127
      %p129 = scmp.ne.s32.totalorder %s120, %s121
      %p130 = scmp.eq.s32.totalorder %s23, 0
      %p131 = por %p129, %p130
      %p132 = scmp.ne.s32.totalorder %s120, %s121
      %p133 = scmp.eq.s32.totalorder %s24, 1
      %p134 = por %p132, %p133
      %p136 = scmp.ne.s32.totalorder %s121, %s135
      %p137 = scmp.eq.s32.totalorder %s24, 0
      %p138 = por %p136, %p137
      %s139 = ssub.s32 %s25, %s37
      %s140 = ssub.s32 %s26, %s33
      %s141 = sor.u32 %s139, %s140
      %p142 = scmp.eq.s32.totalorder %s141, 0
      %s144 = sadd.s32 %s143, 1
      %s145 = scalar_select %p142, %s143, %s144
      %p148 = pneg %p142
      %p149 = scmp.eq.s32.totalorder %s18, 1
      %p150 = por %p148, %p149
      %p151 = scmp.ne.s32.totalorder %s143, %s146
      %p152 = scmp.eq.s32.totalorder %s18, 0
      %p153 = por %p151, %p152
      %p154 = scmp.ne.s32.totalorder %s143, %s146
      %p155 = scmp.eq.s32.totalorder %s23, 1
      %p156 = por %p154, %p155
      %p157 = scmp.ne.s32.totalorder %s146, %s147
      %p158 = scmp.eq.s32.totalorder %s23, 0
      %p159 = por %p157, %p158
      %p160 = scmp.ne.s32.totalorder %s146, %s147
      %p161 = scmp.eq.s32.totalorder %s24, 1
      %p162 = por %p160, %p161
      %p164 = scmp.ne.s32.totalorder %s147, %s163
      %p165 = scmp.eq.s32.totalorder %s24, 0
      %p166 = por %p164, %p165
      %s167 = ssub.s32 %s25, %s37
      %s168 = ssub.s32 %s26, %s33
      %s169 = sor.u32 %s167, %s168
      %p170 = scmp.eq.s32.totalorder %s169, 0
      %s172 = sadd.s32 %s171, 1
      %s173 = scalar_select %p170, %s171, %s172
      %p176 = pneg %p170
      %p177 = scmp.eq.s32.totalorder %s18, 1
      %p178 = por %p176, %p177
      %p179 = scmp.ne.s32.totalorder %s171, %s174
      %p180 = scmp.eq.s32.totalorder %s18, 0
      %p181 = por %p179, %p180
      %p182 = scmp.ne.s32.totalorder %s171, %s174
      %p183 = scmp.eq.s32.totalorder %s23, 1
      %p184 = por %p182, %p183
      %p185 = scmp.ne.s32.totalorder %s174, %s175
      %p186 = scmp.eq.s32.totalorder %s23, 0
      %p187 = por %p185, %p186
      %p188 = scmp.ne.s32.totalorder %s174, %s175
      %p189 = scmp.eq.s32.totalorder %s24, 1
      %p190 = por %p188, %p189
      %p192 = scmp.ne.s32.totalorder %s175, %s191
      %p193 = scmp.eq.s32.totalorder %s24, 0
      %p194 = por %p192, %p193
      %p195 = scmp.le.s32.totalorder 1, %s18
      %p196 = scmp.lt.s32.totalorder %s18, 3
      %p197 = pnand %p195, %p196
      %p198 = pneg %p197
      // Predicated region
      $region9: #{tpu_custom_call.1} parent=5 // pred_check
        _
      $region10: #{tpu_custom_call.1} parent=5 // pred_check_branch
        %200 = sbr.rel (%p197) target = $region12
      $region11: #{tpu_custom_call.1} parent=5 // pred_region
        %s201 = ssub.s32 %s18, 1
        // Predicated region
        $region13: #{tpu_custom_call.1} parent=11 // pred_check
          %p202 = pneg %p131
        $region14: #{tpu_custom_call.1} parent=11 // pred_check_branch
          %204 = sbr.rel (%p202) target = $region16
        $region15: #{tpu_custom_call.1} parent=11 // pred_region
          _
        $region16: #{tpu_custom_call.1} parent=11 // pred_fallthru
          _
      $region12: #{tpu_custom_call.1} parent=5 // pred_fallthru
        _
      %p205 = scmp.lt.s32.totalorder %s18, 2
      // Predicated region
      $region17: #{tpu_custom_call.1} parent=5 // pred_check
        %p206 = pneg %p205
      $region18: #{tpu_custom_call.1} parent=5 // pred_check_branch
        %208 = sbr.rel (%p206) target = $region20
      $region19: #{tpu_custom_call.1} parent=5 // pred_region
        // Predicated region
        $region21: #{tpu_custom_call.1} parent=19 // pred_check
          %p209 = pneg %p52
        $region22: #{tpu_custom_call.1} parent=19 // pred_check_branch
          %211 = sbr.rel (%p209) target = $region24
        $region23: #{tpu_custom_call.1} parent=19 // pred_region
          %p212 = scmp.lt.s32.totalorder %s25, 1
          %s213 = scalar_select %p212, %s25, 1
          %p214 = scmp.lt.s32.totalorder %s26, 0
          %s215 = scalar_select %p214, %s26, 0
          %s216 = sadd.s32 %s215, %s213
          %s217 = smul.addr %s216, 8
          %s218 = scalar_lea.vmem %s0, %s217
        $region24: #{tpu_custom_call.1} parent=19 // pred_fallthru
          _
        // Predicated region
        $region25: #{tpu_custom_call.1} parent=19 // pred_check
          %p219 = pneg %p78
        $region26: #{tpu_custom_call.1} parent=19 // pred_check_branch
          %221 = sbr.rel (%p219) target = $region28
        $region27: #{tpu_custom_call.1} parent=19 // pred_region
          %p222 = scmp.lt.s32.totalorder %s25, 1
          %s223 = scalar_select %p222, %s25, 1
          %s224 = smul.addr %s223, 16
          %s225 = smul.addr %s224, 8
          %s226 = scalar_lea.vmem %s1, %s225
        $region28: #{tpu_custom_call.1} parent=19 // pred_fallthru
          _
        // Predicated region
        $region29: #{tpu_custom_call.1} parent=19 // pred_check
          %p227 = pneg %p104
        $region30: #{tpu_custom_call.1} parent=19 // pred_check_branch
          %229 = sbr.rel (%p227) target = $region32
        $region31: #{tpu_custom_call.1} parent=19 // pred_region
          %p230 = scmp.lt.s32.totalorder %s25, 1
          %s231 = scalar_select %p230, %s25, 1
          %s232 = smul.addr %s231, 16
          %s233 = smul.addr %s232, 8
          %s234 = scalar_lea.vmem %s2, %s233
        $region32: #{tpu_custom_call.1} parent=19 // pred_fallthru
          _
      $region20: #{tpu_custom_call.1} parent=5 // pred_fallthru
        _
      %p235 = scmp.le.s32.totalorder 1, %s18
      %p236 = scmp.lt.s32.totalorder %s18, 3
      %p237 = pnand %p235, %p236
      %p238 = pneg %p237
      // Predicated region
      $region33: #{tpu_custom_call.1} parent=5 // pred_check
        _
      $region34: #{tpu_custom_call.1} parent=5 // pred_check_branch
        %240 = sbr.rel (%p237) target = $region36
      $region35: #{tpu_custom_call.1} parent=5 // pred_region
        %s241 = ssub.s32 %s18, 1
        %p242 = scmp.lt.s32.totalorder %s27, 1
        %s243 = scalar_select %p242, %s27, 1
        %p244 = scmp.lt.s32.totalorder %s28, 0
        %s245 = scalar_select %p244, %s28, 0
        %s246 = sadd.s32 %s245, %s243
        %s247 = smul.addr %s246, 8
        %s248 = scalar_lea.vmem %s0, %s247
        %p249 = pneg %p58
        %p250 = pneg %p55
        %p251 = scmp.lt.s32.totalorder %s27, 1
        %s252 = scalar_select %p251, %s27, 1
        %s253 = smul.addr %s252, 16
        %s254 = smul.addr %s253, 8
        %s255 = scalar_lea.vmem %s1, %s254
        %p256 = pneg %p84
        %p257 = pneg %p81
        %p258 = scmp.lt.s32.totalorder %s27, 1
        %s259 = scalar_select %p258, %s27, 1
        %s260 = smul.addr %s259, 16
        %s261 = smul.addr %s260, 8
        %s262 = scalar_lea.vmem %s2, %s261
        %p263 = pneg %p110
        %p264 = pneg %p107
        %p265 = pneg %p131
        %p266 = pneg %p128
        %p267 = pneg %p159
        %p268 = pneg %p156
        %s269 = sand.u32 %s146, 1
        %s270 = scalar_lea.sflag [#allocation3], %s269
        %s271 = sand.u32 %s146, 1
        %s272 = smul.addr %s271, 8
        %s273 = scalar_lea.vmem [#allocation2], %s272
        %p274 = pneg %p187
        %p275 = pneg %p184
        %s276 = sand.u32 %s174, 1
        %s277 = scalar_lea.sflag [#allocation5], %s276
        %s278 = sand.u32 %s174, 1
        %s279 = smul.addr %s278, 8
        %s280 = scalar_lea.vmem [#allocation4], %s279
        %p281 = scmp.lt.s32.totalorder %s27, 1
        %s282 = scalar_select %p281, %s27, 1
        %p283 = scmp.lt.s32.totalorder %s28, 0
        %s284 = scalar_select %p283, %s28, 0
        %s285 = sadd.s32 %s284, %s282
        %s286 = smul.addr %s285, 8
        %s287 = scalar_lea.vmem %s0, %s286
        %p288 = scmp.lt.s32.totalorder %s27, 1
        %s289 = scalar_select %p288, %s27, 1
        %s290 = smul.addr %s289, 16
        %s291 = smul.addr %s290, 8
        %s292 = scalar_lea.vmem %s1, %s291
        %p293 = scmp.lt.s32.totalorder %s27, 1
        %s294 = scalar_select %p293, %s27, 1
        %s295 = smul.addr %s294, 16
        %s296 = smul.addr %s295, 8
        %s297 = scalar_lea.vmem %s2, %s296
        %v298 = vld [vmem:[%s287] sm:$0xff]
        %v299 = vmul.f32 %v298, 0.17677669
        %v300 = vld [vmem:[%s292] sm:$0xff]
        %v301 = vld [vmem:[%s292 + $0x8] sm:$0xff]
        %v302 = vld [vmem:[%s292 + $0x10] sm:$0xff]
        %v303 = vld [vmem:[%s292 + $0x18] sm:$0xff]
        %v304 = vld [vmem:[%s292 + $0x20] sm:$0xff]
        %v305 = vld [vmem:[%s292 + $0x28] sm:$0xff]
        %v306 = vld [vmem:[%s292 + $0x30] sm:$0xff]
        %v307 = vld [vmem:[%s292 + $0x38] sm:$0xff]
        %v308 = vld [vmem:[%s292 + $0x40] sm:$0xff]
        %v309 = vld [vmem:[%s292 + $0x48] sm:$0xff]
        %v310 = vld [vmem:[%s292 + $0x50] sm:$0xff]
        %v311 = vld [vmem:[%s292 + $0x58] sm:$0xff]
        %v312 = vld [vmem:[%s292 + $0x60] sm:$0xff]
        %v313 = vld [vmem:[%s292 + $0x68] sm:$0xff]
        %v314 = vld [vmem:[%s292 + $0x70] sm:$0xff]
        %v315 = vld [vmem:[%s292 + $0x78] sm:$0xff]
        %v316 = vld [vmem:[%s297] sm:$0xff]
        %v317 = vld [vmem:[%s297 + $0x8] sm:$0xff]
        %v318 = vld [vmem:[%s297 + $0x10] sm:$0xff]
        %v319 = vld [vmem:[%s297 + $0x18] sm:$0xff]
        %v320 = vld [vmem:[%s297 + $0x20] sm:$0xff]
        %v321 = vld [vmem:[%s297 + $0x28] sm:$0xff]
        %v322 = vld [vmem:[%s297 + $0x30] sm:$0xff]
        %v323 = vld [vmem:[%s297 + $0x38] sm:$0xff]
        %v324 = vld [vmem:[%s297 + $0x40] sm:$0xff]
        %v325 = vld [vmem:[%s297 + $0x48] sm:$0xff]
        %v326 = vld [vmem:[%s297 + $0x50] sm:$0xff]
        %v327 = vld [vmem:[%s297 + $0x58] sm:$0xff]
        %v328 = vld [vmem:[%s297 + $0x60] sm:$0xff]
        %v329 = vld [vmem:[%s297 + $0x68] sm:$0xff]
        %v330 = vld [vmem:[%s297 + $0x70] sm:$0xff]
        %v331 = vld [vmem:[%s297 + $0x78] sm:$0xff]
        %v332 = vld [vmem:[%s3] sm:$0x1]
        %v334 = vperm.slane %v332, 0
        %vm336 = vcmask 261120
        %v338 = vsel %vm336, %v299, 0
        %v341 = vsel %vm336, %v300, 0
        %v344 = vsel %vm336, %v301, 0
        %v347 = vsel %vm336, %v302, 0
        %v350 = vsel %vm336, %v303, 0
        %v353 = vsel %vm336, %v304, 0
        %v356 = vsel %vm336, %v305, 0
        %v359 = vsel %vm336, %v306, 0
        %v362 = vsel %vm336, %v307, 0
        %v365 = vsel %vm336, %v308, 0
        %v368 = vsel %vm336, %v309, 0
        %v371 = vsel %vm336, %v310, 0
        %v374 = vsel %vm336, %v311, 0
        %v377 = vsel %vm336, %v312, 0
        %v380 = vsel %vm336, %v313, 0
        %v383 = vsel %vm336, %v314, 0
        %v386 = vsel %vm336, %v315, 0
        %388 = vmatpush.xpose.msra.mxu0 %v386
        %389 = vmatpush.xpose.msra.mxu0 %v383
        %390 = vmatpush.xpose.msra.mxu0 %v380
        %391 = vmatpush.xpose.msra.mxu0 %v377
        %392 = vmatpush.xpose.msra.mxu0 %v374
        %393 = vmatpush.xpose.msra.mxu0 %v371
        %394 = vmatpush.xpose.msra.mxu0 %v368
        %395 = vmatpush.xpose.msra.mxu0 %v365
        %396 = vmatpush.xpose.msra.mxu0 %v362
        %397 = vmatpush.xpose.msra.mxu0 %v359
        %398 = vmatpush.xpose.msra.mxu0 %v356
        %399 = vmatpush.xpose.msra.mxu0 %v353
        %400 = vmatpush.xpose.msra.mxu0 %v350
        %401 = vmatpush.xpose.msra.mxu0 %v347
        %402 = vmatpush.xpose.msra.mxu0 %v344
        %403 = vmatpush.xpose.msra.mxu0 %v341
        %404 = vmatmul.f32.gmra.mxu0 %v338
        %v405 = vpop.f32.mrf.mxu0
        %v406 = vadd.f32 %v334, %v405
        %407 = vdwg.mxu0
        %408 = vmax.xlane.f32.xlu0 %v406
        %v409 = vpop.xlane.xlu0 %408
        %v410 = vsub.f32 %v406, %v409
        %v411 = vmul.f32 %v410, 1.442695
        %v412 = vpow.pop %v411
        %413 = vadd.xlane.f32.xlu0 %v412
        %v414 = vpop.xlane.xlu0 %413
        %v415 = vrcp.pop %v414
        %v416 = vmul.f32 %v412, %v415
        %417 = vmatpush.msra.mxu0 %v331
        %418 = vmatpush.msra.mxu0 %v330
        %419 = vmatpush.msra.mxu0 %v329
        %420 = vmatpush.msra.mxu0 %v328
        %421 = vmatpush.msra.mxu0 %v327
        %422 = vmatpush.msra.mxu0 %v326
        %423 = vmatpush.msra.mxu0 %v325
        %424 = vmatpush.msra.mxu0 %v324
        %425 = vmatpush.msra.mxu0 %v323
        %426 = vmatpush.msra.mxu0 %v322
        %427 = vmatpush.msra.mxu0 %v321
        %428 = vmatpush.msra.mxu0 %v320
        %429 = vmatpush.msra.mxu0 %v319
        %430 = vmatpush.msra.mxu0 %v318
        %431 = vmatpush.msra.mxu0 %v317
        %432 = vmatpush.msra.mxu0 %v316
        %433 = vmatmul.f32.gmra.mxu0 %v416
        %v434 = vpop.f32.mrf.mxu0
        %v435 = vadd.f32 0.0, %v434
        %436 = vdwg.mxu0
        %437 = vst [vmem:[%s280] sm:$0xff] %v416
        %438 = vst [vmem:[%s273] sm:$0xff] %v435
        %s439 = sand.u32 %s146, 1
        %s440 = scalar_lea.sflag [#allocation3], %s439
        %s441 = sand.u32 %s146, 1
        %s442 = smul.addr %s441, 8
        %s443 = scalar_lea.vmem [#allocation2], %s442
        %s444 = sand.u32 %s174, 1
        %s445 = scalar_lea.sflag [#allocation5], %s444
        %s446 = sand.u32 %s174, 1
        %s447 = smul.addr %s446, 8
        %s448 = scalar_lea.vmem [#allocation4], %s447
        // Predicated region
        $region37: #{tpu_custom_call.1} parent=35 // pred_check
          %p449 = pneg %p156
        $region38: #{tpu_custom_call.1} parent=35 // pred_check_branch
          %451 = sbr.rel (%p449) target = $region40
        $region39: #{tpu_custom_call.1} parent=35 // pred_region
          %453 = vsyncadd %s440, 0
          %s454 = sadd.s32 %s28, %s27
          %s455 = smul.addr %s454, 8
          %s456 = scalar_lea.hbm %s4, %s455
          %s458 = sshll.u32 %s443, 4
          %s459 = int_to_ptr.vmem [resolvable:$true] %s458
          %s460 = sshll.u32 %s456, 4
          %s461 = int_to_ptr.hbm [resolvable:$true] %s460
          %463 = dma.vmem_to_hbm [thread:$0]  %s459, 128, %s461, %s440
        $region40: #{tpu_custom_call.1} parent=35 // pred_fallthru
          _
        // Predicated region
        $region41: #{tpu_custom_call.1} parent=35 // pred_check
          %p464 = pneg %p184
        $region42: #{tpu_custom_call.1} parent=35 // pred_check_branch
          %466 = sbr.rel (%p464) target = $region44
        $region43: #{tpu_custom_call.1} parent=35 // pred_region
          %468 = vsyncadd %s445, 0
          %s469 = sadd.s32 %s28, %s27
          %s470 = smul.addr %s469, 8
          %s471 = scalar_lea.hbm %s5, %s470
          %s473 = sshll.u32 %s448, 4
          %s474 = int_to_ptr.vmem [resolvable:$true] %s473
          %s475 = sshll.u32 %s471, 4
          %s476 = int_to_ptr.hbm [resolvable:$true] %s475
          %478 = dma.vmem_to_hbm [thread:$0]  %s474, 128, %s476, %s445
        $region44: #{tpu_custom_call.1} parent=35 // pred_fallthru
          _
      $region36: #{tpu_custom_call.1} parent=5 // pred_fallthru
        _
      %p479 = scmp.le.s32.totalorder 2, %s18
      // Predicated region
      $region45: #{tpu_custom_call.1} parent=5 // pred_check
        %p480 = pneg %p479
      $region46: #{tpu_custom_call.1} parent=5 // pred_check_branch
        %482 = sbr.rel (%p480) target = $region48
      $region47: #{tpu_custom_call.1} parent=5 // pred_region
        %s483 = ssub.s32 %s18, 2
        // Predicated region
        $region49: #{tpu_custom_call.1} parent=47 // pred_check
          %p484 = pneg %p162
        $region50: #{tpu_custom_call.1} parent=47 // pred_check_branch
          %486 = sbr.rel (%p484) target = $region52
        $region51: #{tpu_custom_call.1} parent=47 // pred_region
          %s487 = sand.u32 %s147, 1
          %s488 = scalar_lea.sflag [#allocation3], %s487
          %s489 = sand.u32 %s147, 1
          %s490 = smul.addr %s489, 8
          %s491 = scalar_lea.vmem [#allocation2], %s490
          %493 = dma.done %s488, 128
        $region52: #{tpu_custom_call.1} parent=47 // pred_fallthru
          _
        // Predicated region
        $region53: #{tpu_custom_call.1} parent=47 // pred_check
          %p494 = pneg %p190
        $region54: #{tpu_custom_call.1} parent=47 // pred_check_branch
          %496 = sbr.rel (%p494) target = $region56
        $region55: #{tpu_custom_call.1} parent=47 // pred_region
          %s497 = sand.u32 %s175, 1
          %s498 = scalar_lea.sflag [#allocation5], %s497
          %s499 = sand.u32 %s175, 1
          %s500 = smul.addr %s499, 8
          %s501 = scalar_lea.vmem [#allocation4], %s500
          %503 = dma.done %s498, 128
        $region56: #{tpu_custom_call.1} parent=47 // pred_fallthru
          _
      $region48: #{tpu_custom_call.1} parent=5 // pred_fallthru
        _
    $region6: #{tpu_custom_call.1} parent=1 // loop_footer
      %s22 = sadd.s32 1, %s18
    $region7: #{tpu_custom_call.1} parent=1 // loop_footer_branch
      %17 = sbr.rel target = $region3
    $region8: #{tpu_custom_call.1} parent=1 // loop_exit
      _
    %504 = vsyncpa [#allocation3], 1
    %s505 = scalar_lea.sflag [#allocation3], 1
    %506 = vsyncpa %s505, 1
    %507 = vsyncpa [#allocation5], 1
    %s508 = scalar_lea.sflag [#allocation5], 1
    %509 = vsyncpa %s508, 1

</llo_original>
